<compile_context>
chip_gen: v5e
topology: v5e:2x2
jax: 0.10.0
libtpu: 0.0.40
codegen_flags: <defaults>
</compile_context>

<pallas_src>
import jax
import jax.numpy as jnp
from jax.experimental import pallas as pl
from jax.experimental.pallas import tpu as pltpu


def _round_up(x, m):
    return (x + m - 1) // m * m


# ----------------------------------------------------------------------------
# Kernel: one batch tile, both layers fused.
# ----------------------------------------------------------------------------
def autoencoder_kernel(x_ref, w_enc_ref, b_enc_ref, w_dec_ref, b_dec_ref,
                       out_ref):
    # x may arrive as f32 (lane-aligned fast path, cast in-kernel) or bf16
    # (feature-padded path, already cast in the wrapper).
    x = x_ref[...].astype(jnp.bfloat16)

    # encoder: z = relu(x @ W_enc + b_enc); MXU bf16 with f32 accumulate.
    z = jnp.dot(x, w_enc_ref[...],
                preferred_element_type=jnp.float32)          # (TB, Hp) f32
    z = jnp.maximum(z + b_enc_ref[...], 0.0)                 # f32 epilogue

    # decoder: y = z @ W_dec + b_dec
    y = jnp.dot(z.astype(jnp.bfloat16), w_dec_ref[...],
                preferred_element_type=jnp.float32)          # (TB, Dp) f32
    out_ref[...] = (y + b_dec_ref[...]).astype(out_ref.dtype)


# ----------------------------------------------------------------------------
# One-time parameter preparation (call at model init / cache the result).
# ----------------------------------------------------------------------------
def prepare_params(w_enc, b_enc, w_dec, b_dec):
    """Pad feature dims to 128 lanes, cast weights to bf16, biases to f32."""
    D, H = w_enc.shape
    assert w_enc.shape == (D, H)
    assert w_dec.shape == (H, D)
    b_enc = jnp.reshape(b_enc, (1, H))
    b_dec = jnp.reshape(b_dec, (1, D))

    Dp = _round_up(D, 128)
    Hp = _round_up(H, 128)

    w_enc_p = jnp.pad(w_enc.astype(jnp.bfloat16), ((0, Dp - D), (0, Hp - H)))
    b_enc_p = jnp.pad(b_enc.astype(jnp.float32), ((0, 0), (0, Hp - H)))
    w_dec_p = jnp.pad(w_dec.astype(jnp.bfloat16), ((0, Hp - H), (0, Dp - D)))
    b_dec_p = jnp.pad(b_dec.astype(jnp.float32), ((0, 0), (0, Dp - D)))

    return dict(w_enc=w_enc_p, b_enc=b_enc_p, w_dec=w_dec_p, b_dec=b_dec_p,
                D=D, H=H, Dp=Dp, Hp=Hp)


# ----------------------------------------------------------------------------
# Forward pass.
# ----------------------------------------------------------------------------
def autoencoder_forward(x, params, *, tb_max=1024, out_dtype=None):
    """x: (B, D); params: output of prepare_params."""
    B, D = x.shape
    assert D == params["D"], "input feature dim mismatch"
    Dp, Hp = params["Dp"], params["Hp"]
    out_dtype = x.dtype if out_dtype is None else out_dtype

    # --- activations: only the feature dim ever needs a wrapper copy ---------
    if Dp != D:
        # single fused pad+cast pass (zero-fill on K is semantically required)
        x_in = jnp.pad(x, ((0, 0), (0, Dp - D))).astype(jnp.bfloat16)
    else:
        x_in = x  # no wrapper pass; kernel casts to bf16 in VMEM

    # --- batch tile: large, multiple of 16, but >= 2 grid steps if possible --
    TB = min(tb_max, _round_up(pl.cdiv(B, 2), 16))
    TB = max(16, _round_up(TB, 16))
    num_tiles = pl.cdiv(B, TB)          # no batch padding; Pallas masks overhang

    # --- explicit scoped-VMEM budget (with headroom) --------------------------
    x_item = jnp.dtype(x_in.dtype).itemsize
    o_item = jnp.dtype(out_dtype).itemsize
    needed = (2 * TB * Dp * x_item            # x tile, double-buffered
              + 2 * TB * Dp * o_item          # out tile, double-buffered
              + (Dp * Hp + Hp * Dp) * 2       # weights, single-buffered bf16
              + 8 * (Hp + Dp) * 4)            # biases (sublane-padded f32)
    vmem_limit = int(min(100 * 2**20, max(24 * 2**20, 2 * needed)))

    def _call(single_buffer_weights):
        w_kw = ({"pipeline_mode": pl.Buffered(1)}
                if single_buffer_weights else {})
        in_specs = [
            # batch-tiled activations (double-buffered by BlockSpec)
            pl.BlockSpec((TB, Dp), lambda i: (i, 0)),
            # weights / biases: constant index map -> DMA'd once, VMEM-resident
            pl.BlockSpec((Dp, Hp), lambda i: (0, 0), **w_kw),
            pl.BlockSpec((1, Hp), lambda i: (0, 0), **w_kw),
            pl.BlockSpec((Hp, Dp), lambda i: (0, 0), **w_kw),
            pl.BlockSpec((1, Dp), lambda i: (0, 0), **w_kw),
        ]
        return pl.pallas_call(
            autoencoder_kernel,
            out_shape=jax.ShapeDtypeStruct((B, Dp), out_dtype),
            grid_spec=pltpu.PrefetchScalarGridSpec(
                num_scalar_prefetch=0,
                grid=(num_tiles,),
                in_specs=in_specs,
                out_specs=pl.BlockSpec((TB, Dp), lambda i: (i, 0)),
            ),
            compiler_params=pltpu.CompilerParams(
                dimension_semantics=("parallel",),
                vmem_limit_bytes=vmem_limit),
        )(x_in, params["w_enc"], params["b_enc"],
          params["w_dec"], params["b_dec"])

    try:
        out_p = _call(True)
    except Exception:
        # Fallback for JAX builds that reject single-buffered BlockSpecs.
        out_p = _call(False)

    return out_p if Dp == D else out_p[:, :D]


def reference_forward(x, w_enc, b_enc, w_dec, b_dec):
    z = jnp.maximum(x @ w_enc + b_enc, 0.0)
    return z @ w_dec + b_dec


if __name__ == "__main__":
    key = jax.random.PRNGKey(0)
    k_x, k_we, k_be, k_wd, k_bd = jax.random.split(key, 5)

    # --- case 1: unaligned features (D=64 -> padded to 128), ragged batch ----
    # B=40 with TB=32 exercises the 2-step grid and the masked last block.
    B, D, H = 40, 64, 32
    x = jax.random.normal(k_x, (B, D), dtype=jnp.float32)
    w_enc = jax.random.normal(k_we, (D, H), dtype=jnp.float32) * (1.0 / D) ** 0.5
    b_enc = jax.random.normal(k_be, (1, H), dtype=jnp.float32) * 0.01
    w_dec = jax.random.normal(k_wd, (H, D), dtype=jnp.float32) * (1.0 / H) ** 0.5
    b_dec = jax.random.normal(k_bd, (1, D), dtype=jnp.float32) * 0.01

    params = prepare_params(w_enc, b_enc, w_dec, b_dec)
    out = jax.block_until_ready(autoencoder_forward(x, params))
    ref = reference_forward(x, w_enc, b_enc, w_dec, b_dec)
    assert out.shape == (B, D)
    # bf16 matmul inputs with f32 accumulation -> loose tolerance vs f32 ref.
    assert jnp.allclose(out, ref, atol=5e-2, rtol=5e-2), "case1 mismatch"

    # --- case 2: lane-aligned features (D=128) -> x passed through untouched -
    B2, D2, H2 = 48, 128, 128
    x2 = jax.random.normal(k_x, (B2, D2), dtype=jnp.float32)
    w_enc2 = jax.random.normal(k_we, (D2, H2), dtype=jnp.float32) * (1.0 / D2) ** 0.5
    b_enc2 = jax.random.normal(k_be, (1, H2), dtype=jnp.float32) * 0.01
    w_dec2 = jax.random.normal(k_wd, (H2, D2), dtype=jnp.float32) * (1.0 / H2) ** 0.5
    b_dec2 = jax.random.normal(k_bd, (1, D2), dtype=jnp.float32) * 0.01

    params2 = prepare_params(w_enc2, b_enc2, w_dec2, b_dec2)
    out2 = jax.block_until_ready(autoencoder_forward(x2, params2))
    ref2 = reference_forward(x2, w_enc2, b_enc2, w_dec2, b_dec2)
    assert out2.shape == (B2, D2)
    assert jnp.allclose(out2, ref2, atol=5e-2, rtol=5e-2), "case2 mismatch"

    print("KERNEL_OK")
</pallas_src>

<mosaic_0001>
module attributes {stable_mosaic.version = 11 : i64} {
  func.func @autoencoder_kernel(%arg0: i32, %arg1: memref<32x128xbf16, #tpu.memory_space<vmem>>, %arg2: memref<128x128xbf16, #tpu.memory_space<vmem>>, %arg3: memref<1x128xf32, #tpu.memory_space<vmem>>, %arg4: memref<128x128xbf16, #tpu.memory_space<vmem>>, %arg5: memref<1x128xf32, #tpu.memory_space<vmem>>, %arg6: memref<32x128xf32, #tpu.memory_space<vmem>>) attributes {dimension_semantics = [#tpu.dimension_semantics<parallel>], iteration_bounds = array<i64: 2>, scalar_prefetch = 0 : i64, scratch_operands = 0 : i64, tpu.core_type = #tpu.core_type<tc>, window_params = [{transform_indices = @transform_0, window_bounds = array<i64: 32, 128>}, {pipeline_mode = #tpu.pipeline_mode<synchronous>, transform_indices = @transform_1, window_bounds = array<i64: 128, 128>}, {pipeline_mode = #tpu.pipeline_mode<synchronous>, transform_indices = @transform_2, window_bounds = array<i64: 1, 128>}, {pipeline_mode = #tpu.pipeline_mode<synchronous>, transform_indices = @transform_3, window_bounds = array<i64: 128, 128>}, {pipeline_mode = #tpu.pipeline_mode<synchronous>, transform_indices = @transform_4, window_bounds = array<i64: 1, 128>}, {transform_indices = @transform_5, window_bounds = array<i64: 32, 128>}]} {
    %c0 = arith.constant 0 : index
    %c0_0 = arith.constant 0 : index
    %0 = vector.load %arg1[%c0, %c0_0] : memref<32x128xbf16, #tpu.memory_space<vmem>>, vector<32x128xbf16>
    %c0_1 = arith.constant 0 : index
    %c0_2 = arith.constant 0 : index
    %1 = vector.load %arg2[%c0_1, %c0_2] : memref<128x128xbf16, #tpu.memory_space<vmem>>, vector<128x128xbf16>
    %cst = arith.constant dense<0.000000e+00> : vector<32x128xf32>
    %2 = tpu.matmul %0, %1, %cst {dimension_numbers = #tpu.dot_dimension_numbers<[1], [0], [0], [1], [0, 0, 1, 1], [], []>} : vector<32x128xbf16>, vector<128x128xbf16>, vector<32x128xf32> -> vector<32x128xf32>
    %c0_3 = arith.constant 0 : index
    %c0_4 = arith.constant 0 : index
    %3 = vector.load %arg3[%c0_3, %c0_4] : memref<1x128xf32, #tpu.memory_space<vmem>>, vector<1x128xf32>
    %4 = vector.broadcast %3 : vector<1x128xf32> to vector<32x128xf32>
    %5 = arith.addf %2, %4 : vector<32x128xf32>
    %cst_5 = arith.constant 0.000000e+00 : f32
    %6 = vector.broadcast %cst_5 : f32 to vector<32x128xf32>
    %7 = arith.maximumf %5, %6 : vector<32x128xf32>
    %8 = arith.truncf %7 : vector<32x128xf32> to vector<32x128xbf16>
    %c0_6 = arith.constant 0 : index
    %c0_7 = arith.constant 0 : index
    %9 = vector.load %arg4[%c0_6, %c0_7] : memref<128x128xbf16, #tpu.memory_space<vmem>>, vector<128x128xbf16>
    %cst_8 = arith.constant dense<0.000000e+00> : vector<32x128xf32>
    %10 = tpu.matmul %8, %9, %cst_8 {dimension_numbers = #tpu.dot_dimension_numbers<[1], [0], [0], [1], [0, 0, 1, 1], [], []>} : vector<32x128xbf16>, vector<128x128xbf16>, vector<32x128xf32> -> vector<32x128xf32>
    %c0_9 = arith.constant 0 : index
    %c0_10 = arith.constant 0 : index
    %11 = vector.load %arg5[%c0_9, %c0_10] : memref<1x128xf32, #tpu.memory_space<vmem>>, vector<1x128xf32>
    %12 = vector.broadcast %11 : vector<1x128xf32> to vector<32x128xf32>
    %13 = arith.addf %10, %12 : vector<32x128xf32>
    %c0_11 = arith.constant 0 : index
    %c0_12 = arith.constant 0 : index
    %14 = vector.load %arg6[%c0_11, %c0_12] : memref<32x128xf32, #tpu.memory_space<vmem>>, vector<32x128xf32>
    tpu.vector_store %arg6[%c0_11, %c0_12], %13 {strides = array<i32>} : memref<32x128xf32, #tpu.memory_space<vmem>>, vector<32x128xf32>,
    return
  }
  func.func @transform_0(%arg0: i32) -> (i32, i32) {
    %c0_i32 = arith.constant 0 : i32
    %c0_i32_0 = arith.constant 0 : i32
    return %arg0, %c0_i32 : i32, i32
  }
  func.func @transform_1(%arg0: i32) -> (i32, i32) {
    %c0_i32 = arith.constant 0 : i32
    %c0_i32_0 = arith.constant 0 : i32
    %c0_i32_1 = arith.constant 0 : i32
    return %c0_i32, %c0_i32_0 : i32, i32
  }
  func.func @transform_2(%arg0: i32) -> (i32, i32) {
    %c0_i32 = arith.constant 0 : i32
    %c0_i32_0 = arith.constant 0 : i32
    %c0_i32_1 = arith.constant 0 : i32
    return %c0_i32, %c0_i32_0 : i32, i32
  }
  func.func @transform_3(%arg0: i32) -> (i32, i32) {
    %c0_i32 = arith.constant 0 : i32
    %c0_i32_0 = arith.constant 0 : i32
    %c0_i32_1 = arith.constant 0 : i32
    return %c0_i32, %c0_i32_0 : i32, i32
  }
  func.func @transform_4(%arg0: i32) -> (i32, i32) {
    %c0_i32 = arith.constant 0 : i32
    %c0_i32_0 = arith.constant 0 : i32
    %c0_i32_1 = arith.constant 0 : i32
    return %c0_i32, %c0_i32_0 : i32, i32
  }
  func.func @transform_5(%arg0: i32) -> (i32, i32) {
    %c0_i32 = arith.constant 0 : i32
    %c0_i32_0 = arith.constant 0 : i32
    return %arg0, %c0_i32 : i32, i32
  }
}

module attributes {stable_mosaic.version = 11 : i64} {
  func.func @autoencoder_kernel(%arg0: i32, %arg1: memref<32x128xbf16, #tpu.memory_space<vmem>>, %arg2: memref<128x128xbf16, #tpu.memory_space<vmem>>, %arg3: memref<1x128xf32, #tpu.memory_space<vmem>>, %arg4: memref<128x128xbf16, #tpu.memory_space<vmem>>, %arg5: memref<1x128xf32, #tpu.memory_space<vmem>>, %arg6: memref<32x128xf32, #tpu.memory_space<vmem>>) attributes {dimension_semantics = [#tpu.dimension_semantics<parallel>], iteration_bounds = array<i64: 2>, scalar_prefetch = 0 : i64, scratch_operands = 0 : i64, tpu.core_type = #tpu.core_type<tc>, window_params = [{transform_indices = @transform_0, window_bounds = array<i64: 32, 128>}, {pipeline_mode = #tpu.pipeline_mode<synchronous>, transform_indices = @transform_1, window_bounds = array<i64: 128, 128>}, {pipeline_mode = #tpu.pipeline_mode<synchronous>, transform_indices = @transform_2, window_bounds = array<i64: 1, 128>}, {pipeline_mode = #tpu.pipeline_mode<synchronous>, transform_indices = @transform_3, window_bounds = array<i64: 128, 128>}, {pipeline_mode = #tpu.pipeline_mode<synchronous>, transform_indices = @transform_4, window_bounds = array<i64: 1, 128>}, {transform_indices = @transform_5, window_bounds = array<i64: 32, 128>}]} {
    %c0 = arith.constant 0 : index
    %c0_0 = arith.constant 0 : index
    %0 = vector.load %arg1[%c0, %c0_0] : memref<32x128xbf16, #tpu.memory_space<vmem>>, vector<32x128xbf16>
    %c0_1 = arith.constant 0 : index
    %c0_2 = arith.constant 0 : index
    %1 = vector.load %arg2[%c0_1, %c0_2] : memref<128x128xbf16, #tpu.memory_space<vmem>>, vector<128x128xbf16>
    %cst = arith.constant dense<0.000000e+00> : vector<32x128xf32>
    %2 = tpu.matmul %0, %1, %cst {dimension_numbers = #tpu.dot_dimension_numbers<[1], [0], [0], [1], [0, 0, 1, 1], [], []>} : vector<32x128xbf16>, vector<128x128xbf16>, vector<32x128xf32> -> vector<32x128xf32>
    %c0_3 = arith.constant 0 : index
    %c0_4 = arith.constant 0 : index
    %3 = vector.load %arg3[%c0_3, %c0_4] : memref<1x128xf32, #tpu.memory_space<vmem>>, vector<1x128xf32>
    %4 = vector.broadcast %3 : vector<1x128xf32> to vector<32x128xf32>
    %5 = arith.addf %2, %4 : vector<32x128xf32>
    %cst_5 = arith.constant 0.000000e+00 : f32
    %6 = vector.broadcast %cst_5 : f32 to vector<32x128xf32>
    %7 = arith.maximumf %5, %6 : vector<32x128xf32>
    %8 = arith.truncf %7 : vector<32x128xf32> to vector<32x128xbf16>
    %c0_6 = arith.constant 0 : index
    %c0_7 = arith.constant 0 : index
    %9 = vector.load %arg4[%c0_6, %c0_7] : memref<128x128xbf16, #tpu.memory_space<vmem>>, vector<128x128xbf16>
    %cst_8 = arith.constant dense<0.000000e+00> : vector<32x128xf32>
    %10 = tpu.matmul %8, %9, %cst_8 {dimension_numbers = #tpu.dot_dimension_numbers<[1], [0], [0], [1], [0, 0, 1, 1], [], []>} : vector<32x128xbf16>, vector<128x128xbf16>, vector<32x128xf32> -> vector<32x128xf32>
    %c0_9 = arith.constant 0 : index
    %c0_10 = arith.constant 0 : index
    %11 = vector.load %arg5[%c0_9, %c0_10] : memref<1x128xf32, #tpu.memory_space<vmem>>, vector<1x128xf32>
    %12 = vector.broadcast %11 : vector<1x128xf32> to vector<32x128xf32>
    %13 = arith.addf %10, %12 : vector<32x128xf32>
    %c0_11 = arith.constant 0 : index
    %c0_12 = arith.constant 0 : index
    %14 = vector.load %arg6[%c0_11, %c0_12] : memref<32x128xf32, #tpu.memory_space<vmem>>, vector<32x128xf32>
    tpu.vector_store %arg6[%c0_11, %c0_12], %13 {strides = array<i32>} : memref<32x128xf32, #tpu.memory_space<vmem>>, vector<32x128xf32>,
    return
  }
  func.func @transform_0(%arg0: i32) -> (i32, i32) {
    %c0_i32 = arith.constant 0 : i32
    %c0_i32_0 = arith.constant 0 : i32
    return %arg0, %c0_i32 : i32, i32
  }
  func.func @transform_1(%arg0: i32) -> (i32, i32) {
    %c0_i32 = arith.constant 0 : i32
    %c0_i32_0 = arith.constant 0 : i32
    %c0_i32_1 = arith.constant 0 : i32
    return %c0_i32, %c0_i32_0 : i32, i32
  }
  func.func @transform_2(%arg0: i32) -> (i32, i32) {
    %c0_i32 = arith.constant 0 : i32
    %c0_i32_0 = arith.constant 0 : i32
    %c0_i32_1 = arith.constant 0 : i32
    return %c0_i32, %c0_i32_0 : i32, i32
  }
  func.func @transform_3(%arg0: i32) -> (i32, i32) {
    %c0_i32 = arith.constant 0 : i32
    %c0_i32_0 = arith.constant 0 : i32
    %c0_i32_1 = arith.constant 0 : i32
    return %c0_i32, %c0_i32_0 : i32, i32
  }
  func.func @transform_4(%arg0: i32) -> (i32, i32) {
    %c0_i32 = arith.constant 0 : i32
    %c0_i32_0 = arith.constant 0 : i32
    %c0_i32_1 = arith.constant 0 : i32
    return %c0_i32, %c0_i32_0 : i32, i32
  }
  func.func @transform_5(%arg0: i32) -> (i32, i32) {
    %c0_i32 = arith.constant 0 : i32
    %c0_i32_0 = arith.constant 0 : i32
    return %arg0, %c0_i32 : i32, i32
  }
}

</mosaic_0001>

<llo_original>
// kernel: tpu_custom_call.1
$region0: #{tpu_custom_call.1}
  #allocation0 [shape = 'u32[]', space=smem, size = 0x4, offset = 0x4, fixed_abs, tag = 'smem constant byte address 0x4 - core index']
  #allocation1 [shape = 'u32[72,128]{1,0:T(1,128)}', space=vmem, size = 0x9000, scoped, tag = 'internal scratch']
  %s0 = inlined_call_operand.hbm [shape: bf16[40,128], index: 0, kind: input, shape index: {}]
  %s1 = inlined_call_operand.hbm [shape: bf16[128,128], index: 1, kind: input, shape index: {}]
  %s2 = inlined_call_operand.vmem [shape: f32[1,128], index: 2, kind: input, shape index: {}]
  %s3 = inlined_call_operand.hbm [shape: bf16[128,128], index: 3, kind: input, shape index: {}]
  %s4 = inlined_call_operand.vmem [shape: f32[1,128], index: 4, kind: input, shape index: {}]
  %s5 = inlined_call_operand.hbm [shape: f32[40,128], index: 5, kind: output, shape index: {}]
  %s6 = sld [smem:[#allocation0]]
  $region65: #{tpu_custom_call.1} parent=0
    _
  %s8 = ssub.s32 1, %s6
  %s9 = scalar_select 0, %s8, %s6
  $region1: #{tpu_custom_call.1} parent=0
    #allocation2 [shape = 'u8[16384]{0}', space=vmem, size = 0x4000, scoped, tag = 'input window, operand 0']
    #allocation3 [shape = 's32[2]{0}', space=sflag, size = 0x8, scoped, tag = 'scoped memory for tpu_custom_call.1']
    #allocation4 [shape = 's32[2]{0}', space=sflag, size = 0x8, scoped, tag = 'scoped memory for tpu_custom_call.1']
    #allocation5 [shape = 'u8[32768]{0}', space=vmem, size = 0x8000, scoped, tag = 'input window, operand 1, single buffered']
    #allocation6 [shape = 's32[1]{0}', space=sflag, size = 0x4, scoped, tag = 'scoped memory for tpu_custom_call.1']
    #allocation7 [shape = 'u8[32768]{0}', space=vmem, size = 0x8000, scoped, tag = 'input window, operand 3, single buffered']
    #allocation8 [shape = 'u8[32768]{0}', space=vmem, size = 0x8000, scoped, tag = 'output window, operand 0']
    %10 = vsyncpa [#allocation3], 0
    %s11 = scalar_lea.sflag [#allocation3], 1
    %12 = vsyncpa %s11, 0
    %13 = vsyncpa [#allocation6], 0
    %14 = vsyncpa [#allocation4], 0
    %s15 = scalar_lea.sflag [#allocation4], 1
    %16 = vsyncpa %s15, 0
    loop: start=0, step=1, limit=4
    $region2: #{tpu_custom_call.1} parent=1 // loop_pre_header
      _
    $region3: #{tpu_custom_call.1} parent=1 // loop_header
      %s18 = sphi 0, %s22
      %p19 = scmp.ge.s32.totalorder %s18, 4
      %s28 = sphi 0, %s30
      %s31 = sphi 0, %s28
      %s32 = sphi 0, %s31
      %s48 = sphi 0, %s32
      %s52 = sphi 0, %s52
      %s54 = sphi 0, %s52
      %s55 = sphi 0, %s54
      %s69 = sphi 0, %s55
      %s73 = sphi 0, %s73
      %s75 = sphi 0, %s73
      %s76 = sphi 0, %s75
      %s90 = sphi 0, %s76
      %s94 = sphi 0, %s94
      %s96 = sphi 0, %s94
      %s97 = sphi 0, %s96
      %s111 = sphi 0, %s97
      %s115 = sphi 0, %s115
      %s117 = sphi 0, %s115
      %s118 = sphi 0, %s117
      %s132 = sphi 0, %s118
      %s138 = sphi 0, %s140
      %s141 = sphi 0, %s138
      %s142 = sphi 0, %s141
      %s158 = sphi 0, %s142
    $region4: #{tpu_custom_call.1} parent=1 // loop_header_branch
      %21 = sbr.rel (%p19) target = $region8
    $region5: #{tpu_custom_call.1} parent=1 // loop_body
      %s23 = ssub.s32 %s18, 1
      %s24 = ssub.s32 %s18, 2
      %s25 = sadd.s32 %s18, 1
      %s26 = ssub.s32 %s18, %s25
      %p27 = scmp.eq.s32.totalorder %s26, 0
      %s29 = sadd.s32 %s28, 1
      %s30 = scalar_select %p27, %s28, %s29
      %p33 = pneg %p27
      %p34 = scmp.eq.s32.totalorder %s18, 1
      %p35 = por %p33, %p34
      %p36 = scmp.ne.s32.totalorder %s28, %s31
      %p37 = scmp.eq.s32.totalorder %s18, 0
      %p38 = por %p36, %p37
      %p39 = scmp.ne.s32.totalorder %s28, %s31
      %p40 = scmp.eq.s32.totalorder %s23, 1
      %p41 = por %p39, %p40
      %p42 = scmp.ne.s32.totalorder %s31, %s32
      %p43 = scmp.eq.s32.totalorder %s23, 0
      %p44 = por %p42, %p43
      %p45 = scmp.ne.s32.totalorder %s31, %s32
      %p46 = scmp.eq.s32.totalorder %s24, 1
      %p47 = por %p45, %p46
      %p49 = scmp.ne.s32.totalorder %s32, %s48
      %p50 = scmp.eq.s32.totalorder %s24, 0
      %p51 = por %p49, %p50
      %s53 = sadd.s32 %s52, 1
      %p56 = scmp.eq.s32.totalorder %s18, 1
      %p57 = scmp.ne.s32.totalorder %s52, %s54
      %p58 = scmp.eq.s32.totalorder %s18, 0
      %p59 = por %p57, %p58
      %p60 = scmp.ne.s32.totalorder %s52, %s54
      %p61 = scmp.eq.s32.totalorder %s23, 1
      %p62 = por %p60, %p61
      %p63 = scmp.ne.s32.totalorder %s54, %s55
      %p64 = scmp.eq.s32.totalorder %s23, 0
      %p65 = por %p63, %p64
      %p66 = scmp.ne.s32.totalorder %s54, %s55
      %p67 = scmp.eq.s32.totalorder %s24, 1
      %p68 = por %p66, %p67
      %p70 = scmp.ne.s32.totalorder %s55, %s69
      %p71 = scmp.eq.s32.totalorder %s24, 0
      %p72 = por %p70, %p71
      %s74 = sadd.s32 %s73, 1
      %p77 = scmp.eq.s32.totalorder %s18, 1
      %p78 = scmp.ne.s32.totalorder %s73, %s75
      %p79 = scmp.eq.s32.totalorder %s18, 0
      %p80 = por %p78, %p79
      %p81 = scmp.ne.s32.totalorder %s73, %s75
      %p82 = scmp.eq.s32.totalorder %s23, 1
      %p83 = por %p81, %p82
      %p84 = scmp.ne.s32.totalorder %s75, %s76
      %p85 = scmp.eq.s32.totalorder %s23, 0
      %p86 = por %p84, %p85
      %p87 = scmp.ne.s32.totalorder %s75, %s76
      %p88 = scmp.eq.s32.totalorder %s24, 1
      %p89 = por %p87, %p88
      %p91 = scmp.ne.s32.totalorder %s76, %s90
      %p92 = scmp.eq.s32.totalorder %s24, 0
      %p93 = por %p91, %p92
      %s95 = sadd.s32 %s94, 1
      %p98 = scmp.eq.s32.totalorder %s18, 1
      %p99 = scmp.ne.s32.totalorder %s94, %s96
      %p100 = scmp.eq.s32.totalorder %s18, 0
      %p101 = por %p99, %p100
      %p102 = scmp.ne.s32.totalorder %s94, %s96
      %p103 = scmp.eq.s32.totalorder %s23, 1
      %p104 = por %p102, %p103
      %p105 = scmp.ne.s32.totalorder %s96, %s97
      %p106 = scmp.eq.s32.totalorder %s23, 0
      %p107 = por %p105, %p106
      %p108 = scmp.ne.s32.totalorder %s96, %s97
      %p109 = scmp.eq.s32.totalorder %s24, 1
      %p110 = por %p108, %p109
      %p112 = scmp.ne.s32.totalorder %s97, %s111
      %p113 = scmp.eq.s32.totalorder %s24, 0
      %p114 = por %p112, %p113
      %s116 = sadd.s32 %s115, 1
      %p119 = scmp.eq.s32.totalorder %s18, 1
      %p120 = scmp.ne.s32.totalorder %s115, %s117
      %p121 = scmp.eq.s32.totalorder %s18, 0
      %p122 = por %p120, %p121
      %p123 = scmp.ne.s32.totalorder %s115, %s117
      %p124 = scmp.eq.s32.totalorder %s23, 1
      %p125 = por %p123, %p124
      %p126 = scmp.ne.s32.totalorder %s117, %s118
      %p127 = scmp.eq.s32.totalorder %s23, 0
      %p128 = por %p126, %p127
      %p129 = scmp.ne.s32.totalorder %s117, %s118
      %p130 = scmp.eq.s32.totalorder %s24, 1
      %p131 = por %p129, %p130
      %p133 = scmp.ne.s32.totalorder %s118, %s132
      %p134 = scmp.eq.s32.totalorder %s24, 0
      %p135 = por %p133, %p134
      %s136 = ssub.s32 %s18, %s25
      %p137 = scmp.eq.s32.totalorder %s136, 0
      %s139 = sadd.s32 %s138, 1
      %s140 = scalar_select %p137, %s138, %s139
      %p143 = pneg %p137
      %p144 = scmp.eq.s32.totalorder %s18, 1
      %p145 = por %p143, %p144
      %p146 = scmp.ne.s32.totalorder %s138, %s141
      %p147 = scmp.eq.s32.totalorder %s18, 0
      %p148 = por %p146, %p147
      %p149 = scmp.ne.s32.totalorder %s138, %s141
      %p150 = scmp.eq.s32.totalorder %s23, 1
      %p151 = por %p149, %p150
      %p152 = scmp.ne.s32.totalorder %s141, %s142
      %p153 = scmp.eq.s32.totalorder %s23, 0
      %p154 = por %p152, %p153
      %p155 = scmp.ne.s32.totalorder %s141, %s142
      %p156 = scmp.eq.s32.totalorder %s24, 1
      %p157 = por %p155, %p156
      %p159 = scmp.ne.s32.totalorder %s142, %s158
      %p160 = scmp.eq.s32.totalorder %s24, 0
      %p161 = por %p159, %p160
      %p162 = scmp.le.s32.totalorder 1, %s18
      %p163 = scmp.lt.s32.totalorder %s18, 3
      %p164 = pnand %p162, %p163
      %p165 = pneg %p164
      // Predicated region
      $region9: #{tpu_custom_call.1} parent=5 // pred_check
        _
      $region10: #{tpu_custom_call.1} parent=5 // pred_check_branch
        %167 = sbr.rel (%p164) target = $region12
      $region11: #{tpu_custom_call.1} parent=5 // pred_region
        %s168 = ssub.s32 %s18, 1
        // Predicated region
        $region13: #{tpu_custom_call.1} parent=11 // pred_check
          %p169 = pneg %p65
        $region14: #{tpu_custom_call.1} parent=11 // pred_check_branch
          %171 = sbr.rel (%p169) target = $region16
        $region15: #{tpu_custom_call.1} parent=11 // pred_region
          %173 = vsyncadd [#allocation6], 0
          %s174 = sshll.u32 %s1, 4
          %s175 = int_to_ptr.hbm [resolvable:$true] %s174
          %s176 = sshll.u32 [#allocation5], 4
          %s177 = int_to_ptr.vmem [resolvable:$true] %s176
          %182 = dma.hbm_to_vmem [thread:$0]  %s175, 1024, %s177, [#allocation6], 64, 64, 4
        $region16: #{tpu_custom_call.1} parent=11 // pred_fallthru
          _
        // Predicated region
        $region17: #{tpu_custom_call.1} parent=11 // pred_check
          %p183 = pneg %p86
        $region18: #{tpu_custom_call.1} parent=11 // pred_check_branch
          %185 = sbr.rel (%p183) target = $region20
        $region19: #{tpu_custom_call.1} parent=11 // pred_region
          _
        $region20: #{tpu_custom_call.1} parent=11 // pred_fallthru
          _
        // Predicated region
        $region21: #{tpu_custom_call.1} parent=11 // pred_check
          %p186 = pneg %p107
        $region22: #{tpu_custom_call.1} parent=11 // pred_check_branch
          %188 = sbr.rel (%p186) target = $region24
        $region23: #{tpu_custom_call.1} parent=11 // pred_region
          %190 = vsyncadd [#allocation6], 0
          %s191 = sshll.u32 %s3, 4
          %s192 = int_to_ptr.hbm [resolvable:$true] %s191
          %s193 = sshll.u32 [#allocation7], 4
          %s194 = int_to_ptr.vmem [resolvable:$true] %s193
          %199 = dma.hbm_to_vmem [thread:$0]  %s192, 1024, %s194, [#allocation6], 64, 64, 4
        $region24: #{tpu_custom_call.1} parent=11 // pred_fallthru
          _
        // Predicated region
        $region25: #{tpu_custom_call.1} parent=11 // pred_check
          %p200 = pneg %p128
        $region26: #{tpu_custom_call.1} parent=11 // pred_check_branch
          %202 = sbr.rel (%p200) target = $region28
        $region27: #{tpu_custom_call.1} parent=11 // pred_region
          _
        $region28: #{tpu_custom_call.1} parent=11 // pred_fallthru
          _
      $region12: #{tpu_custom_call.1} parent=5 // pred_fallthru
        _
      %p203 = scmp.lt.s32.totalorder %s18, 2
      // Predicated region
      $region29: #{tpu_custom_call.1} parent=5 // pred_check
        %p204 = pneg %p203
      $region30: #{tpu_custom_call.1} parent=5 // pred_check_branch
        %206 = sbr.rel (%p204) target = $region32
      $region31: #{tpu_custom_call.1} parent=5 // pred_region
        // Predicated region
        $region33: #{tpu_custom_call.1} parent=31 // pred_check
          %p207 = pneg %p38
        $region34: #{tpu_custom_call.1} parent=31 // pred_check_branch
          %209 = sbr.rel (%p207) target = $region36
        $region35: #{tpu_custom_call.1} parent=31 // pred_region
          %s210 = sand.u32 %s28, 1
          %s211 = scalar_lea.sflag [#allocation3], %s210
          %s212 = sand.u32 %s28, 1
          %s213 = smul.addr %s212, 16
          %s214 = scalar_lea.vmem [#allocation2], %s213
          %s215 = smul.u32 4, %s18
          %s216 = ssub.s32 5, %s215
          %p217 = scmp.lt.s32.totalorder %s216, 4
          %s218 = scalar_select %p217, %s216, 4
          %s219 = smul.u32 4, %s218
          %s220 = ssub.s32 16, %s219
          %s221 = sshll.u32 %s220, 4
          %222 = vsyncadd %s211, %s221
          %p223 = scmp.ne.s32.totalorder 0, %s219
          %s224 = smul.addr %s215, 4
          %s225 = scalar_lea.hbm %s0, %s224
          %s226 = smul.u32 4, %s218
          %s227 = sshll.u32 %s225, 4
          %s228 = int_to_ptr.hbm [resolvable:$true] %s227
          %s229 = sshll.u32 %s214, 4
          %s230 = int_to_ptr.vmem [resolvable:$true] %s229
          %s231 = sshll.u32 %s226, 4
          %235 = dma.hbm_to_vmem [thread:$0]  (%p223), %s228, %s231, %s230, %s211, 64, 64, 4
        $region36: #{tpu_custom_call.1} parent=31 // pred_fallthru
          _
      $region32: #{tpu_custom_call.1} parent=5 // pred_fallthru
        _
      %p236 = scmp.le.s32.totalorder 1, %s18
      %p237 = scmp.lt.s32.totalorder %s18, 3
      %p238 = pnand %p236, %p237
      %p239 = pneg %p238
      // Predicated region
      $region37: #{tpu_custom_call.1} parent=5 // pred_check
        _
      $region38: #{tpu_custom_call.1} parent=5 // pred_check_branch
        %241 = sbr.rel (%p238) target = $region40
      $region39: #{tpu_custom_call.1} parent=5 // pred_region
        %s242 = ssub.s32 %s18, 1
        %s243 = sand.u32 %s31, 1
        %s244 = scalar_lea.sflag [#allocation3], %s243
        %s245 = sand.u32 %s31, 1
        %s246 = smul.addr %s245, 16
        %s247 = scalar_lea.vmem [#allocation2], %s246
        // Predicated region
        $region41: #{tpu_custom_call.1} parent=39 // pred_check
          %p248 = pneg %p44
        $region42: #{tpu_custom_call.1} parent=39 // pred_check_branch
          %250 = sbr.rel (%p248) target = $region44
        $region43: #{tpu_custom_call.1} parent=39 // pred_region
          %252 = dma.done %s244, 256
        $region44: #{tpu_custom_call.1} parent=39 // pred_fallthru
          _
        // Predicated region
        $region45: #{tpu_custom_call.1} parent=39 // pred_check
          %p253 = pneg %p65
        $region46: #{tpu_custom_call.1} parent=39 // pred_check_branch
          %255 = sbr.rel (%p253) target = $region48
        $region47: #{tpu_custom_call.1} parent=39 // pred_region
          %257 = dma.done [#allocation6], 1024
        $region48: #{tpu_custom_call.1} parent=39 // pred_fallthru
          _
        // Predicated region
        $region49: #{tpu_custom_call.1} parent=39 // pred_check
          %p258 = pneg %p107
        $region50: #{tpu_custom_call.1} parent=39 // pred_check_branch
          %260 = sbr.rel (%p258) target = $region52
        $region51: #{tpu_custom_call.1} parent=39 // pred_region
          %262 = dma.done [#allocation6], 1024
        $region52: #{tpu_custom_call.1} parent=39 // pred_fallthru
          _
        %s263 = sand.u32 %s31, 1
        %s264 = scalar_lea.sflag [#allocation3], %s263
        %s265 = sand.u32 %s31, 1
        %s266 = smul.addr %s265, 16
        %s267 = scalar_lea.vmem [#allocation2], %s266
        %p268 = pneg %p44
        %p269 = pneg %p41
        %p270 = pneg %p65
        %p271 = pneg %p62
        %p272 = pneg %p86
        %p273 = pneg %p83
        %p274 = pneg %p107
        %p275 = pneg %p104
        %p276 = pneg %p128
        %p277 = pneg %p125
        %p278 = pneg %p154
        %p279 = pneg %p151
        %s280 = sand.u32 %s141, 1
        %s281 = scalar_lea.sflag [#allocation4], %s280
        %s282 = sand.u32 %s141, 1
        %s283 = smul.addr %s282, 32
        %s284 = scalar_lea.vmem [#allocation8], %s283
        %s285 = smul.u32 4, %s23
        %s286 = ssub.s32 5, %s285
        %p287 = scmp.lt.s32.totalorder %s286, 4
        %s288 = scalar_select %p287, %s286, 4
        %s289 = smul.u32 4, %s288
        %s290 = smul.u32 4, %s23
        %s291 = ssub.s32 5, %s290
        %p292 = scmp.lt.s32.totalorder %s291, 4
        %s293 = scalar_select %p292, %s291, 4
        %s294 = smul.u32 8, %s293
        %v295 = vld [vmem:[%s247] sm:$0xf]
        %v296 = vld [vmem:[%s247 + $0x4] sm:$0xf]
        %v297 = vld [vmem:[%s247 + $0x8] sm:$0xf]
        %v298 = vld [vmem:[%s247 + $0xc] sm:$0xf]
        %v299 = vld [vmem:[#allocation5] sm:$0xf]
        %v300 = vld [vmem:[#allocation5 + $0x4] sm:$0xf]
        %v301 = vld [vmem:[#allocation5 + $0x8] sm:$0xf]
        %v302 = vld [vmem:[#allocation5 + $0xc] sm:$0xf]
        %v303 = vld [vmem:[#allocation5 + $0x10] sm:$0xf]
        %v304 = vld [vmem:[#allocation5 + $0x14] sm:$0xf]
        %v305 = vld [vmem:[#allocation5 + $0x18] sm:$0xf]
        %v306 = vld [vmem:[#allocation5 + $0x1c] sm:$0xf]
        %v307 = vld [vmem:[#allocation5 + $0x20] sm:$0xf]
        %v308 = vld [vmem:[#allocation5 + $0x24] sm:$0xf]
        %v309 = vld [vmem:[#allocation5 + $0x28] sm:$0xf]
        %v310 = vld [vmem:[#allocation5 + $0x2c] sm:$0xf]
        %v311 = vld [vmem:[#allocation5 + $0x30] sm:$0xf]
        %v312 = vld [vmem:[#allocation5 + $0x34] sm:$0xf]
        %v313 = vld [vmem:[#allocation5 + $0x38] sm:$0xf]
        %v314 = vld [vmem:[#allocation5 + $0x3c] sm:$0xf]
        %v315 = vld [vmem:[%s2] sm:$0x1]
        %v317 = vperm.slane %v315, 0
        %v323 = vunpack.c.l.b16 %v295
        %v324 = vunpack.c.l.b16 %v296
        %v325 = vunpack.c.l.b16 %v297
        %v326 = vunpack.c.l.b16 %v298
        %v327 = vpack.c.b16 %v324, %v323
        %v328 = vpack.c.b16 %v326, %v325
        %v347 = vunpack.c.l.b16 %v299
        %v348 = vunpack.c.l.b16 %v300
        %v349 = vunpack.c.l.b16 %v301
        %v350 = vunpack.c.l.b16 %v302
        %v351 = vunpack.c.l.b16 %v303
        %v352 = vunpack.c.l.b16 %v304
        %v353 = vunpack.c.l.b16 %v305
        %v354 = vunpack.c.l.b16 %v306
        %v355 = vunpack.c.l.b16 %v307
        %v356 = vunpack.c.l.b16 %v308
        %v357 = vunpack.c.l.b16 %v309
        %v358 = vunpack.c.l.b16 %v310
        %v359 = vunpack.c.l.b16 %v311
        %v360 = vunpack.c.l.b16 %v312
        %v361 = vunpack.c.l.b16 %v313
        %v362 = vunpack.c.l.b16 %v314
        %v363 = vpack.c.b16 %v348, %v347
        %v364 = vpack.c.b16 %v350, %v349
        %v365 = vpack.c.b16 %v352, %v351
        %v366 = vpack.c.b16 %v354, %v353
        %v367 = vpack.c.b16 %v356, %v355
        %v368 = vpack.c.b16 %v358, %v357
        %v369 = vpack.c.b16 %v360, %v359
        %v370 = vpack.c.b16 %v362, %v361
        %379 = vmatpush.bf16.msra.mxu0 %v370
        %380 = vmatpush.bf16.msra.mxu0 %v369
        %381 = vmatpush.bf16.msra.mxu0 %v368
        %382 = vmatpush.bf16.msra.mxu0 %v367
        %383 = vmatpush.bf16.msra.mxu0 %v366
        %384 = vmatpush.bf16.msra.mxu0 %v365
        %385 = vmatpush.bf16.msra.mxu0 %v364
        %386 = vmatpush.bf16.msra.mxu0 %v363
        %387 = vmatmul.bf16.gmra.mxu0 %v327
        %v388 = vpop.f32.mrf.mxu0
        %v389 = vadd.f32 %v317, %v388
        %v390 = vpop.f32.mrf.mxu0
        %v391 = vadd.f32 %v317, %v390
        %392 = vmatmul.bf16.gmra.mxu0 %v328
        %v393 = vpop.f32.mrf.mxu0
        %v394 = vadd.f32 %v317, %v393
        %v395 = vpop.f32.mrf.mxu0
        %v396 = vadd.f32 %v317, %v395
        %397 = vdwg.mxu0
        %v398 = vmax.f32 %v389, 0.0
        %v399 = vmax.f32 %v391, 0.0
        %v400 = vmax.f32 %v394, 0.0
        %v401 = vmax.f32 %v396, 0.0
        %v402 = vpack.c.bf16 %v399, %v398
        %v403 = vpack.c.bf16 %v401, %v400
        %v404 = vld [vmem:[#allocation7] sm:$0xf]
        %v405 = vld [vmem:[#allocation7 + $0x4] sm:$0xf]
        %v406 = vld [vmem:[#allocation7 + $0x8] sm:$0xf]
        %v407 = vld [vmem:[#allocation7 + $0xc] sm:$0xf]
        %v408 = vld [vmem:[#allocation7 + $0x10] sm:$0xf]
        %v409 = vld [vmem:[#allocation7 + $0x14] sm:$0xf]
        %v410 = vld [vmem:[#allocation7 + $0x18] sm:$0xf]
        %v411 = vld [vmem:[#allocation7 + $0x1c] sm:$0xf]
        %v412 = vld [vmem:[#allocation7 + $0x20] sm:$0xf]
        %v413 = vld [vmem:[#allocation7 + $0x24] sm:$0xf]
        %v414 = vld [vmem:[#allocation7 + $0x28] sm:$0xf]
        %v415 = vld [vmem:[#allocation7 + $0x2c] sm:$0xf]
        %v416 = vld [vmem:[#allocation7 + $0x30] sm:$0xf]
        %v417 = vld [vmem:[#allocation7 + $0x34] sm:$0xf]
        %v418 = vld [vmem:[#allocation7 + $0x38] sm:$0xf]
        %v419 = vld [vmem:[#allocation7 + $0x3c] sm:$0xf]
        %v420 = vld [vmem:[%s4] sm:$0x1]
        %v422 = vperm.slane %v420, 0
        %v440 = vunpack.c.l.b16 %v404
        %v441 = vunpack.c.l.b16 %v405
        %v442 = vunpack.c.l.b16 %v406
        %v443 = vunpack.c.l.b16 %v407
        %v444 = vunpack.c.l.b16 %v408
        %v445 = vunpack.c.l.b16 %v409
        %v446 = vunpack.c.l.b16 %v410
        %v447 = vunpack.c.l.b16 %v411
        %v448 = vunpack.c.l.b16 %v412
        %v449 = vunpack.c.l.b16 %v413
        %v450 = vunpack.c.l.b16 %v414
        %v451 = vunpack.c.l.b16 %v415
        %v452 = vunpack.c.l.b16 %v416
        %v453 = vunpack.c.l.b16 %v417
        %v454 = vunpack.c.l.b16 %v418
        %v455 = vunpack.c.l.b16 %v419
        %v456 = vpack.c.b16 %v441, %v440
        %v457 = vpack.c.b16 %v443, %v442
        %v458 = vpack.c.b16 %v445, %v444
        %v459 = vpack.c.b16 %v447, %v446
        %v460 = vpack.c.b16 %v449, %v448
        %v461 = vpack.c.b16 %v451, %v450
        %v462 = vpack.c.b16 %v453, %v452
        %v463 = vpack.c.b16 %v455, %v454
        %472 = vmatpush.bf16.msra.mxu0 %v463
        %473 = vmatpush.bf16.msra.mxu0 %v462
        %474 = vmatpush.bf16.msra.mxu0 %v461
        %475 = vmatpush.bf16.msra.mxu0 %v460
        %476 = vmatpush.bf16.msra.mxu0 %v459
        %477 = vmatpush.bf16.msra.mxu0 %v458
        %478 = vmatpush.bf16.msra.mxu0 %v457
        %479 = vmatpush.bf16.msra.mxu0 %v456
        %480 = vmatmul.bf16.gmra.mxu0 %v402
        %v481 = vpop.f32.mrf.mxu0
        %v482 = vadd.f32 %v422, %v481
        %v483 = vpop.f32.mrf.mxu0
        %v484 = vadd.f32 %v422, %v483
        %485 = vmatmul.bf16.gmra.mxu0 %v403
        %v486 = vpop.f32.mrf.mxu0
        %v487 = vadd.f32 %v422, %v486
        %v488 = vpop.f32.mrf.mxu0
        %v489 = vadd.f32 %v422, %v488
        %490 = vdwg.mxu0
        %491 = vst [vmem:[%s284] sm:$0xff] %v482
        %492 = vst [vmem:[%s284 + $0x8] sm:$0xff] %v484
        %493 = vst [vmem:[%s284 + $0x10] sm:$0xff] %v487
        %494 = vst [vmem:[%s284 + $0x18] sm:$0xff] %v489
        %s495 = sand.u32 %s141, 1
        %s496 = scalar_lea.sflag [#allocation4], %s495
        %s497 = sand.u32 %s141, 1
        %s498 = smul.addr %s497, 32
        %s499 = scalar_lea.vmem [#allocation8], %s498
        // Predicated region
        $region53: #{tpu_custom_call.1} parent=39 // pred_check
          %p500 = pneg %p151
        $region54: #{tpu_custom_call.1} parent=39 // pred_check_branch
          %502 = sbr.rel (%p500) target = $region56
        $region55: #{tpu_custom_call.1} parent=39 // pred_region
          %s503 = smul.u32 4, %s23
          %s504 = ssub.s32 5, %s503
          %p505 = scmp.lt.s32.totalorder %s504, 4
          %s506 = scalar_select %p505, %s504, 4
          %s507 = smul.u32 8, %s506
          %s508 = ssub.s32 32, %s507
          %s509 = sshll.u32 %s508, 4
          %510 = vsyncadd %s496, %s509
          %p511 = scmp.ne.s32.totalorder 0, %s507
          %s512 = smul.addr %s503, 8
          %s513 = scalar_lea.hbm %s5, %s512
          %s514 = smul.u32 8, %s506
          %s515 = sshll.u32 %s499, 4
          %s516 = int_to_ptr.vmem [resolvable:$true] %s515
          %s517 = sshll.u32 %s513, 4
          %s518 = int_to_ptr.hbm [resolvable:$true] %s517
          %s519 = sshll.u32 %s514, 4
          %523 = dma.vmem_to_hbm [thread:$0]  (%p511), %s516, %s519, %s518, %s496, 128, 128, 8
        $region56: #{tpu_custom_call.1} parent=39 // pred_fallthru
          _
      $region40: #{tpu_custom_call.1} parent=5 // pred_fallthru
        _
      %p524 = scmp.le.s32.totalorder 2, %s18
      // Predicated region
      $region57: #{tpu_custom_call.1} parent=5 // pred_check
        %p525 = pneg %p524
      $region58: #{tpu_custom_call.1} parent=5 // pred_check_branch
        %527 = sbr.rel (%p525) target = $region60
      $region59: #{tpu_custom_call.1} parent=5 // pred_region
        %s528 = ssub.s32 %s18, 2
        // Predicated region
        $region61: #{tpu_custom_call.1} parent=59 // pred_check
          %p529 = pneg %p157
        $region62: #{tpu_custom_call.1} parent=59 // pred_check_branch
          %531 = sbr.rel (%p529) target = $region64
        $region63: #{tpu_custom_call.1} parent=59 // pred_region
          %s532 = sand.u32 %s142, 1
          %s533 = scalar_lea.sflag [#allocation4], %s532
          %s534 = sand.u32 %s142, 1
          %s535 = smul.addr %s534, 32
          %s536 = scalar_lea.vmem [#allocation8], %s535
          %538 = dma.done %s533, 512
        $region64: #{tpu_custom_call.1} parent=59 // pred_fallthru
          _
      $region60: #{tpu_custom_call.1} parent=5 // pred_fallthru
        _
    $region6: #{tpu_custom_call.1} parent=1 // loop_footer
      %s22 = sadd.s32 1, %s18
    $region7: #{tpu_custom_call.1} parent=1 // loop_footer_branch
      %17 = sbr.rel target = $region3
    $region8: #{tpu_custom_call.1} parent=1 // loop_exit
      _
    %539 = vsyncpa [#allocation3], 1
    %s540 = scalar_lea.sflag [#allocation3], 1
    %541 = vsyncpa %s540, 1
    %542 = vsyncpa [#allocation6], 1
    %543 = vsyncpa [#allocation4], 1
    %s544 = scalar_lea.sflag [#allocation4], 1
    %545 = vsyncpa %s544, 1

// kernel: tpu_custom_call.1
$region0: #{tpu_custom_call.1}
  #allocation0 [shape = 'u32[]', space=smem, size = 0x4, offset = 0x4, fixed_abs, tag = 'smem constant byte address 0x4 - core index']
  #allocation1 [shape = 'u32[72,128]{1,0:T(1,128)}', space=vmem, size = 0x9000, scoped, tag = 'internal scratch']
  %s0 = inlined_call_operand.hbm [shape: bf16[40,128], index: 0, kind: input, shape index: {}]
  %s1 = inlined_call_operand.hbm [shape: bf16[128,128], index: 1, kind: input, shape index: {}]
  %s2 = inlined_call_operand.vmem [shape: f32[1,128], index: 2, kind: input, shape index: {}]
  %s3 = inlined_call_operand.hbm [shape: bf16[128,128], index: 3, kind: input, shape index: {}]
  %s4 = inlined_call_operand.vmem [shape: f32[1,128], index: 4, kind: input, shape index: {}]
  %s5 = inlined_call_operand.hbm [shape: f32[40,128], index: 5, kind: output, shape index: {}]
  %s6 = sld [smem:[#allocation0]]
  $region65: #{tpu_custom_call.1} parent=0
    _
  %s8 = ssub.s32 1, %s6
  %s9 = scalar_select 0, %s8, %s6
  $region1: #{tpu_custom_call.1} parent=0
    #allocation2 [shape = 'u8[16384]{0}', space=vmem, size = 0x4000, scoped, tag = 'input window, operand 0']
    #allocation3 [shape = 's32[2]{0}', space=sflag, size = 0x8, scoped, tag = 'scoped memory for tpu_custom_call.1']
    #allocation4 [shape = 's32[2]{0}', space=sflag, size = 0x8, scoped, tag = 'scoped memory for tpu_custom_call.1']
    #allocation5 [shape = 'u8[32768]{0}', space=vmem, size = 0x8000, scoped, tag = 'input window, operand 1, single buffered']
    #allocation6 [shape = 's32[1]{0}', space=sflag, size = 0x4, scoped, tag = 'scoped memory for tpu_custom_call.1']
    #allocation7 [shape = 'u8[32768]{0}', space=vmem, size = 0x8000, scoped, tag = 'input window, operand 3, single buffered']
    #allocation8 [shape = 'u8[32768]{0}', space=vmem, size = 0x8000, scoped, tag = 'output window, operand 0']
    %10 = vsyncpa [#allocation3], 0
    %s11 = scalar_lea.sflag [#allocation3], 1
    %12 = vsyncpa %s11, 0
    %13 = vsyncpa [#allocation6], 0
    %14 = vsyncpa [#allocation4], 0
    %s15 = scalar_lea.sflag [#allocation4], 1
    %16 = vsyncpa %s15, 0
    loop: start=0, step=1, limit=4
    $region2: #{tpu_custom_call.1} parent=1 // loop_pre_header
      _
    $region3: #{tpu_custom_call.1} parent=1 // loop_header
      %s18 = sphi 0, %s22
      %p19 = scmp.ge.s32.totalorder %s18, 4
      %s28 = sphi 0, %s30
      %s31 = sphi 0, %s28
      %s32 = sphi 0, %s31
      %s48 = sphi 0, %s32
      %s52 = sphi 0, %s52
      %s54 = sphi 0, %s52
      %s55 = sphi 0, %s54
      %s69 = sphi 0, %s55
      %s73 = sphi 0, %s73
      %s75 = sphi 0, %s73
      %s76 = sphi 0, %s75
      %s90 = sphi 0, %s76
      %s94 = sphi 0, %s94
      %s96 = sphi 0, %s94
      %s97 = sphi 0, %s96
      %s111 = sphi 0, %s97
      %s115 = sphi 0, %s115
      %s117 = sphi 0, %s115
      %s118 = sphi 0, %s117
      %s132 = sphi 0, %s118
      %s138 = sphi 0, %s140
      %s141 = sphi 0, %s138
      %s142 = sphi 0, %s141
      %s158 = sphi 0, %s142
    $region4: #{tpu_custom_call.1} parent=1 // loop_header_branch
      %21 = sbr.rel (%p19) target = $region8
    $region5: #{tpu_custom_call.1} parent=1 // loop_body
      %s23 = ssub.s32 %s18, 1
      %s24 = ssub.s32 %s18, 2
      %s25 = sadd.s32 %s18, 1
      %s26 = ssub.s32 %s18, %s25
      %p27 = scmp.eq.s32.totalorder %s26, 0
      %s29 = sadd.s32 %s28, 1
      %s30 = scalar_select %p27, %s28, %s29
      %p33 = pneg %p27
      %p34 = scmp.eq.s32.totalorder %s18, 1
      %p35 = por %p33, %p34
      %p36 = scmp.ne.s32.totalorder %s28, %s31
      %p37 = scmp.eq.s32.totalorder %s18, 0
      %p38 = por %p36, %p37
      %p39 = scmp.ne.s32.totalorder %s28, %s31
      %p40 = scmp.eq.s32.totalorder %s23, 1
      %p41 = por %p39, %p40
      %p42 = scmp.ne.s32.totalorder %s31, %s32
      %p43 = scmp.eq.s32.totalorder %s23, 0
      %p44 = por %p42, %p43
      %p45 = scmp.ne.s32.totalorder %s31, %s32
      %p46 = scmp.eq.s32.totalorder %s24, 1
      %p47 = por %p45, %p46
      %p49 = scmp.ne.s32.totalorder %s32, %s48
      %p50 = scmp.eq.s32.totalorder %s24, 0
      %p51 = por %p49, %p50
      %s53 = sadd.s32 %s52, 1
      %p56 = scmp.eq.s32.totalorder %s18, 1
      %p57 = scmp.ne.s32.totalorder %s52, %s54
      %p58 = scmp.eq.s32.totalorder %s18, 0
      %p59 = por %p57, %p58
      %p60 = scmp.ne.s32.totalorder %s52, %s54
      %p61 = scmp.eq.s32.totalorder %s23, 1
      %p62 = por %p60, %p61
      %p63 = scmp.ne.s32.totalorder %s54, %s55
      %p64 = scmp.eq.s32.totalorder %s23, 0
      %p65 = por %p63, %p64
      %p66 = scmp.ne.s32.totalorder %s54, %s55
      %p67 = scmp.eq.s32.totalorder %s24, 1
      %p68 = por %p66, %p67
      %p70 = scmp.ne.s32.totalorder %s55, %s69
      %p71 = scmp.eq.s32.totalorder %s24, 0
      %p72 = por %p70, %p71
      %s74 = sadd.s32 %s73, 1
      %p77 = scmp.eq.s32.totalorder %s18, 1
      %p78 = scmp.ne.s32.totalorder %s73, %s75
      %p79 = scmp.eq.s32.totalorder %s18, 0
      %p80 = por %p78, %p79
      %p81 = scmp.ne.s32.totalorder %s73, %s75
      %p82 = scmp.eq.s32.totalorder %s23, 1
      %p83 = por %p81, %p82
      %p84 = scmp.ne.s32.totalorder %s75, %s76
      %p85 = scmp.eq.s32.totalorder %s23, 0
      %p86 = por %p84, %p85
      %p87 = scmp.ne.s32.totalorder %s75, %s76
      %p88 = scmp.eq.s32.totalorder %s24, 1
      %p89 = por %p87, %p88
      %p91 = scmp.ne.s32.totalorder %s76, %s90
      %p92 = scmp.eq.s32.totalorder %s24, 0
      %p93 = por %p91, %p92
      %s95 = sadd.s32 %s94, 1
      %p98 = scmp.eq.s32.totalorder %s18, 1
      %p99 = scmp.ne.s32.totalorder %s94, %s96
      %p100 = scmp.eq.s32.totalorder %s18, 0
      %p101 = por %p99, %p100
      %p102 = scmp.ne.s32.totalorder %s94, %s96
      %p103 = scmp.eq.s32.totalorder %s23, 1
      %p104 = por %p102, %p103
      %p105 = scmp.ne.s32.totalorder %s96, %s97
      %p106 = scmp.eq.s32.totalorder %s23, 0
      %p107 = por %p105, %p106
      %p108 = scmp.ne.s32.totalorder %s96, %s97
      %p109 = scmp.eq.s32.totalorder %s24, 1
      %p110 = por %p108, %p109
      %p112 = scmp.ne.s32.totalorder %s97, %s111
      %p113 = scmp.eq.s32.totalorder %s24, 0
      %p114 = por %p112, %p113
      %s116 = sadd.s32 %s115, 1
      %p119 = scmp.eq.s32.totalorder %s18, 1
      %p120 = scmp.ne.s32.totalorder %s115, %s117
      %p121 = scmp.eq.s32.totalorder %s18, 0
      %p122 = por %p120, %p121
      %p123 = scmp.ne.s32.totalorder %s115, %s117
      %p124 = scmp.eq.s32.totalorder %s23, 1
      %p125 = por %p123, %p124
      %p126 = scmp.ne.s32.totalorder %s117, %s118
      %p127 = scmp.eq.s32.totalorder %s23, 0
      %p128 = por %p126, %p127
      %p129 = scmp.ne.s32.totalorder %s117, %s118
      %p130 = scmp.eq.s32.totalorder %s24, 1
      %p131 = por %p129, %p130
      %p133 = scmp.ne.s32.totalorder %s118, %s132
      %p134 = scmp.eq.s32.totalorder %s24, 0
      %p135 = por %p133, %p134
      %s136 = ssub.s32 %s18, %s25
      %p137 = scmp.eq.s32.totalorder %s136, 0
      %s139 = sadd.s32 %s138, 1
      %s140 = scalar_select %p137, %s138, %s139
      %p143 = pneg %p137
      %p144 = scmp.eq.s32.totalorder %s18, 1
      %p145 = por %p143, %p144
      %p146 = scmp.ne.s32.totalorder %s138, %s141
      %p147 = scmp.eq.s32.totalorder %s18, 0
      %p148 = por %p146, %p147
      %p149 = scmp.ne.s32.totalorder %s138, %s141
      %p150 = scmp.eq.s32.totalorder %s23, 1
      %p151 = por %p149, %p150
      %p152 = scmp.ne.s32.totalorder %s141, %s142
      %p153 = scmp.eq.s32.totalorder %s23, 0
      %p154 = por %p152, %p153
      %p155 = scmp.ne.s32.totalorder %s141, %s142
      %p156 = scmp.eq.s32.totalorder %s24, 1
      %p157 = por %p155, %p156
      %p159 = scmp.ne.s32.totalorder %s142, %s158
      %p160 = scmp.eq.s32.totalorder %s24, 0
      %p161 = por %p159, %p160
      %p162 = scmp.le.s32.totalorder 1, %s18
      %p163 = scmp.lt.s32.totalorder %s18, 3
      %p164 = pnand %p162, %p163
      %p165 = pneg %p164
      // Predicated region
      $region9: #{tpu_custom_call.1} parent=5 // pred_check
        _
      $region10: #{tpu_custom_call.1} parent=5 // pred_check_branch
        %167 = sbr.rel (%p164) target = $region12
      $region11: #{tpu_custom_call.1} parent=5 // pred_region
        %s168 = ssub.s32 %s18, 1
        // Predicated region
        $region13: #{tpu_custom_call.1} parent=11 // pred_check
          %p169 = pneg %p65
        $region14: #{tpu_custom_call.1} parent=11 // pred_check_branch
          %171 = sbr.rel (%p169) target = $region16
        $region15: #{tpu_custom_call.1} parent=11 // pred_region
          %173 = vsyncadd [#allocation6], 0
          %s174 = sshll.u32 %s1, 4
          %s175 = int_to_ptr.hbm [resolvable:$true] %s174
          %s176 = sshll.u32 [#allocation5], 4
          %s177 = int_to_ptr.vmem [resolvable:$true] %s176
          %182 = dma.hbm_to_vmem [thread:$0]  %s175, 1024, %s177, [#allocation6], 64, 64, 4
        $region16: #{tpu_custom_call.1} parent=11 // pred_fallthru
          _
        // Predicated region
        $region17: #{tpu_custom_call.1} parent=11 // pred_check
          %p183 = pneg %p86
        $region18: #{tpu_custom_call.1} parent=11 // pred_check_branch
          %185 = sbr.rel (%p183) target = $region20
        $region19: #{tpu_custom_call.1} parent=11 // pred_region
          _
        $region20: #{tpu_custom_call.1} parent=11 // pred_fallthru
          _
        // Predicated region
        $region21: #{tpu_custom_call.1} parent=11 // pred_check
          %p186 = pneg %p107
        $region22: #{tpu_custom_call.1} parent=11 // pred_check_branch
          %188 = sbr.rel (%p186) target = $region24
        $region23: #{tpu_custom_call.1} parent=11 // pred_region
          %190 = vsyncadd [#allocation6], 0
          %s191 = sshll.u32 %s3, 4
          %s192 = int_to_ptr.hbm [resolvable:$true] %s191
          %s193 = sshll.u32 [#allocation7], 4
          %s194 = int_to_ptr.vmem [resolvable:$true] %s193
          %199 = dma.hbm_to_vmem [thread:$0]  %s192, 1024, %s194, [#allocation6], 64, 64, 4
        $region24: #{tpu_custom_call.1} parent=11 // pred_fallthru
          _
        // Predicated region
        $region25: #{tpu_custom_call.1} parent=11 // pred_check
          %p200 = pneg %p128
        $region26: #{tpu_custom_call.1} parent=11 // pred_check_branch
          %202 = sbr.rel (%p200) target = $region28
        $region27: #{tpu_custom_call.1} parent=11 // pred_region
          _
        $region28: #{tpu_custom_call.1} parent=11 // pred_fallthru
          _
      $region12: #{tpu_custom_call.1} parent=5 // pred_fallthru
        _
      %p203 = scmp.lt.s32.totalorder %s18, 2
      // Predicated region
      $region29: #{tpu_custom_call.1} parent=5 // pred_check
        %p204 = pneg %p203
      $region30: #{tpu_custom_call.1} parent=5 // pred_check_branch
        %206 = sbr.rel (%p204) target = $region32
      $region31: #{tpu_custom_call.1} parent=5 // pred_region
        // Predicated region
        $region33: #{tpu_custom_call.1} parent=31 // pred_check
          %p207 = pneg %p38
        $region34: #{tpu_custom_call.1} parent=31 // pred_check_branch
          %209 = sbr.rel (%p207) target = $region36
        $region35: #{tpu_custom_call.1} parent=31 // pred_region
          %s210 = sand.u32 %s28, 1
          %s211 = scalar_lea.sflag [#allocation3], %s210
          %s212 = sand.u32 %s28, 1
          %s213 = smul.addr %s212, 16
          %s214 = scalar_lea.vmem [#allocation2], %s213
          %s215 = smul.u32 4, %s18
          %s216 = ssub.s32 5, %s215
          %p217 = scmp.lt.s32.totalorder %s216, 4
          %s218 = scalar_select %p217, %s216, 4
          %s219 = smul.u32 4, %s218
          %s220 = ssub.s32 16, %s219
          %s221 = sshll.u32 %s220, 4
          %222 = vsyncadd %s211, %s221
          %p223 = scmp.ne.s32.totalorder 0, %s219
          %s224 = smul.addr %s215, 4
          %s225 = scalar_lea.hbm %s0, %s224
          %s226 = smul.u32 4, %s218
          %s227 = sshll.u32 %s225, 4
          %s228 = int_to_ptr.hbm [resolvable:$true] %s227
          %s229 = sshll.u32 %s214, 4
          %s230 = int_to_ptr.vmem [resolvable:$true] %s229
          %s231 = sshll.u32 %s226, 4
          %235 = dma.hbm_to_vmem [thread:$0]  (%p223), %s228, %s231, %s230, %s211, 64, 64, 4
        $region36: #{tpu_custom_call.1} parent=31 // pred_fallthru
          _
      $region32: #{tpu_custom_call.1} parent=5 // pred_fallthru
        _
      %p236 = scmp.le.s32.totalorder 1, %s18
      %p237 = scmp.lt.s32.totalorder %s18, 3
      %p238 = pnand %p236, %p237
      %p239 = pneg %p238
      // Predicated region
      $region37: #{tpu_custom_call.1} parent=5 // pred_check
        _
      $region38: #{tpu_custom_call.1} parent=5 // pred_check_branch
        %241 = sbr.rel (%p238) target = $region40
      $region39: #{tpu_custom_call.1} parent=5 // pred_region
        %s242 = ssub.s32 %s18, 1
        %s243 = sand.u32 %s31, 1
        %s244 = scalar_lea.sflag [#allocation3], %s243
        %s245 = sand.u32 %s31, 1
        %s246 = smul.addr %s245, 16
        %s247 = scalar_lea.vmem [#allocation2], %s246
        // Predicated region
        $region41: #{tpu_custom_call.1} parent=39 // pred_check
          %p248 = pneg %p44
        $region42: #{tpu_custom_call.1} parent=39 // pred_check_branch
          %250 = sbr.rel (%p248) target = $region44
        $region43: #{tpu_custom_call.1} parent=39 // pred_region
          %252 = dma.done %s244, 256
        $region44: #{tpu_custom_call.1} parent=39 // pred_fallthru
          _
        // Predicated region
        $region45: #{tpu_custom_call.1} parent=39 // pred_check
          %p253 = pneg %p65
        $region46: #{tpu_custom_call.1} parent=39 // pred_check_branch
          %255 = sbr.rel (%p253) target = $region48
        $region47: #{tpu_custom_call.1} parent=39 // pred_region
          %257 = dma.done [#allocation6], 1024
        $region48: #{tpu_custom_call.1} parent=39 // pred_fallthru
          _
        // Predicated region
        $region49: #{tpu_custom_call.1} parent=39 // pred_check
          %p258 = pneg %p107
        $region50: #{tpu_custom_call.1} parent=39 // pred_check_branch
          %260 = sbr.rel (%p258) target = $region52
        $region51: #{tpu_custom_call.1} parent=39 // pred_region
          %262 = dma.done [#allocation6], 1024
        $region52: #{tpu_custom_call.1} parent=39 // pred_fallthru
          _
        %s263 = sand.u32 %s31, 1
        %s264 = scalar_lea.sflag [#allocation3], %s263
        %s265 = sand.u32 %s31, 1
        %s266 = smul.addr %s265, 16
        %s267 = scalar_lea.vmem [#allocation2], %s266
        %p268 = pneg %p44
        %p269 = pneg %p41
        %p270 = pneg %p65
        %p271 = pneg %p62
        %p272 = pneg %p86
        %p273 = pneg %p83
        %p274 = pneg %p107
        %p275 = pneg %p104
        %p276 = pneg %p128
        %p277 = pneg %p125
        %p278 = pneg %p154
        %p279 = pneg %p151
        %s280 = sand.u32 %s141, 1
        %s281 = scalar_lea.sflag [#allocation4], %s280
        %s282 = sand.u32 %s141, 1
        %s283 = smul.addr %s282, 32
        %s284 = scalar_lea.vmem [#allocation8], %s283
        %s285 = smul.u32 4, %s23
        %s286 = ssub.s32 5, %s285
        %p287 = scmp.lt.s32.totalorder %s286, 4
        %s288 = scalar_select %p287, %s286, 4
        %s289 = smul.u32 4, %s288
        %s290 = smul.u32 4, %s23
        %s291 = ssub.s32 5, %s290
        %p292 = scmp.lt.s32.totalorder %s291, 4
        %s293 = scalar_select %p292, %s291, 4
        %s294 = smul.u32 8, %s293
        %v295 = vld [vmem:[%s247] sm:$0xf]
        %v296 = vld [vmem:[%s247 + $0x4] sm:$0xf]
        %v297 = vld [vmem:[%s247 + $0x8] sm:$0xf]
        %v298 = vld [vmem:[%s247 + $0xc] sm:$0xf]
        %v299 = vld [vmem:[#allocation5] sm:$0xf]
        %v300 = vld [vmem:[#allocation5 + $0x4] sm:$0xf]
        %v301 = vld [vmem:[#allocation5 + $0x8] sm:$0xf]
        %v302 = vld [vmem:[#allocation5 + $0xc] sm:$0xf]
        %v303 = vld [vmem:[#allocation5 + $0x10] sm:$0xf]
        %v304 = vld [vmem:[#allocation5 + $0x14] sm:$0xf]
        %v305 = vld [vmem:[#allocation5 + $0x18] sm:$0xf]
        %v306 = vld [vmem:[#allocation5 + $0x1c] sm:$0xf]
        %v307 = vld [vmem:[#allocation5 + $0x20] sm:$0xf]
        %v308 = vld [vmem:[#allocation5 + $0x24] sm:$0xf]
        %v309 = vld [vmem:[#allocation5 + $0x28] sm:$0xf]
        %v310 = vld [vmem:[#allocation5 + $0x2c] sm:$0xf]
        %v311 = vld [vmem:[#allocation5 + $0x30] sm:$0xf]
        %v312 = vld [vmem:[#allocation5 + $0x34] sm:$0xf]
        %v313 = vld [vmem:[#allocation5 + $0x38] sm:$0xf]
        %v314 = vld [vmem:[#allocation5 + $0x3c] sm:$0xf]
        %v315 = vld [vmem:[%s2] sm:$0x1]
        %v317 = vperm.slane %v315, 0
        %v323 = vunpack.c.l.b16 %v295
        %v324 = vunpack.c.l.b16 %v296
        %v325 = vunpack.c.l.b16 %v297
        %v326 = vunpack.c.l.b16 %v298
        %v327 = vpack.c.b16 %v324, %v323
        %v328 = vpack.c.b16 %v326, %v325
        %v347 = vunpack.c.l.b16 %v299
        %v348 = vunpack.c.l.b16 %v300
        %v349 = vunpack.c.l.b16 %v301
        %v350 = vunpack.c.l.b16 %v302
        %v351 = vunpack.c.l.b16 %v303
        %v352 = vunpack.c.l.b16 %v304
        %v353 = vunpack.c.l.b16 %v305
        %v354 = vunpack.c.l.b16 %v306
        %v355 = vunpack.c.l.b16 %v307
        %v356 = vunpack.c.l.b16 %v308
        %v357 = vunpack.c.l.b16 %v309
        %v358 = vunpack.c.l.b16 %v310
        %v359 = vunpack.c.l.b16 %v311
        %v360 = vunpack.c.l.b16 %v312
        %v361 = vunpack.c.l.b16 %v313
        %v362 = vunpack.c.l.b16 %v314
        %v363 = vpack.c.b16 %v348, %v347
        %v364 = vpack.c.b16 %v350, %v349
        %v365 = vpack.c.b16 %v352, %v351
        %v366 = vpack.c.b16 %v354, %v353
        %v367 = vpack.c.b16 %v356, %v355
        %v368 = vpack.c.b16 %v358, %v357
        %v369 = vpack.c.b16 %v360, %v359
        %v370 = vpack.c.b16 %v362, %v361
        %379 = vmatpush.bf16.msra.mxu0 %v370
        %380 = vmatpush.bf16.msra.mxu0 %v369
        %381 = vmatpush.bf16.msra.mxu0 %v368
        %382 = vmatpush.bf16.msra.mxu0 %v367
        %383 = vmatpush.bf16.msra.mxu0 %v366
        %384 = vmatpush.bf16.msra.mxu0 %v365
        %385 = vmatpush.bf16.msra.mxu0 %v364
        %386 = vmatpush.bf16.msra.mxu0 %v363
        %387 = vmatmul.bf16.gmra.mxu0 %v327
        %v388 = vpop.f32.mrf.mxu0
        %v389 = vadd.f32 %v317, %v388
        %v390 = vpop.f32.mrf.mxu0
        %v391 = vadd.f32 %v317, %v390
        %392 = vmatmul.bf16.gmra.mxu0 %v328
        %v393 = vpop.f32.mrf.mxu0
        %v394 = vadd.f32 %v317, %v393
        %v395 = vpop.f32.mrf.mxu0
        %v396 = vadd.f32 %v317, %v395
        %397 = vdwg.mxu0
        %v398 = vmax.f32 %v389, 0.0
        %v399 = vmax.f32 %v391, 0.0
        %v400 = vmax.f32 %v394, 0.0
        %v401 = vmax.f32 %v396, 0.0
        %v402 = vpack.c.bf16 %v399, %v398
        %v403 = vpack.c.bf16 %v401, %v400
        %v404 = vld [vmem:[#allocation7] sm:$0xf]
        %v405 = vld [vmem:[#allocation7 + $0x4] sm:$0xf]
        %v406 = vld [vmem:[#allocation7 + $0x8] sm:$0xf]
        %v407 = vld [vmem:[#allocation7 + $0xc] sm:$0xf]
        %v408 = vld [vmem:[#allocation7 + $0x10] sm:$0xf]
        %v409 = vld [vmem:[#allocation7 + $0x14] sm:$0xf]
        %v410 = vld [vmem:[#allocation7 + $0x18] sm:$0xf]
        %v411 = vld [vmem:[#allocation7 + $0x1c] sm:$0xf]
        %v412 = vld [vmem:[#allocation7 + $0x20] sm:$0xf]
        %v413 = vld [vmem:[#allocation7 + $0x24] sm:$0xf]
        %v414 = vld [vmem:[#allocation7 + $0x28] sm:$0xf]
        %v415 = vld [vmem:[#allocation7 + $0x2c] sm:$0xf]
        %v416 = vld [vmem:[#allocation7 + $0x30] sm:$0xf]
        %v417 = vld [vmem:[#allocation7 + $0x34] sm:$0xf]
        %v418 = vld [vmem:[#allocation7 + $0x38] sm:$0xf]
        %v419 = vld [vmem:[#allocation7 + $0x3c] sm:$0xf]
        %v420 = vld [vmem:[%s4] sm:$0x1]
        %v422 = vperm.slane %v420, 0
        %v440 = vunpack.c.l.b16 %v404
        %v441 = vunpack.c.l.b16 %v405
        %v442 = vunpack.c.l.b16 %v406
        %v443 = vunpack.c.l.b16 %v407
        %v444 = vunpack.c.l.b16 %v408
        %v445 = vunpack.c.l.b16 %v409
        %v446 = vunpack.c.l.b16 %v410
        %v447 = vunpack.c.l.b16 %v411
        %v448 = vunpack.c.l.b16 %v412
        %v449 = vunpack.c.l.b16 %v413
        %v450 = vunpack.c.l.b16 %v414
        %v451 = vunpack.c.l.b16 %v415
        %v452 = vunpack.c.l.b16 %v416
        %v453 = vunpack.c.l.b16 %v417
        %v454 = vunpack.c.l.b16 %v418
        %v455 = vunpack.c.l.b16 %v419
        %v456 = vpack.c.b16 %v441, %v440
        %v457 = vpack.c.b16 %v443, %v442
        %v458 = vpack.c.b16 %v445, %v444
        %v459 = vpack.c.b16 %v447, %v446
        %v460 = vpack.c.b16 %v449, %v448
        %v461 = vpack.c.b16 %v451, %v450
        %v462 = vpack.c.b16 %v453, %v452
        %v463 = vpack.c.b16 %v455, %v454
        %472 = vmatpush.bf16.msra.mxu0 %v463
        %473 = vmatpush.bf16.msra.mxu0 %v462
        %474 = vmatpush.bf16.msra.mxu0 %v461
        %475 = vmatpush.bf16.msra.mxu0 %v460
        %476 = vmatpush.bf16.msra.mxu0 %v459
        %477 = vmatpush.bf16.msra.mxu0 %v458
        %478 = vmatpush.bf16.msra.mxu0 %v457
        %479 = vmatpush.bf16.msra.mxu0 %v456
        %480 = vmatmul.bf16.gmra.mxu0 %v402
        %v481 = vpop.f32.mrf.mxu0
        %v482 = vadd.f32 %v422, %v481
        %v483 = vpop.f32.mrf.mxu0
        %v484 = vadd.f32 %v422, %v483
        %485 = vmatmul.bf16.gmra.mxu0 %v403
        %v486 = vpop.f32.mrf.mxu0
        %v487 = vadd.f32 %v422, %v486
        %v488 = vpop.f32.mrf.mxu0
        %v489 = vadd.f32 %v422, %v488
        %490 = vdwg.mxu0
        %491 = vst [vmem:[%s284] sm:$0xff] %v482
        %492 = vst [vmem:[%s284 + $0x8] sm:$0xff] %v484
        %493 = vst [vmem:[%s284 + $0x10] sm:$0xff] %v487
        %494 = vst [vmem:[%s284 + $0x18] sm:$0xff] %v489
        %s495 = sand.u32 %s141, 1
        %s496 = scalar_lea.sflag [#allocation4], %s495
        %s497 = sand.u32 %s141, 1
        %s498 = smul.addr %s497, 32
        %s499 = scalar_lea.vmem [#allocation8], %s498
        // Predicated region
        $region53: #{tpu_custom_call.1} parent=39 // pred_check
          %p500 = pneg %p151
        $region54: #{tpu_custom_call.1} parent=39 // pred_check_branch
          %502 = sbr.rel (%p500) target = $region56
        $region55: #{tpu_custom_call.1} parent=39 // pred_region
          %s503 = smul.u32 4, %s23
          %s504 = ssub.s32 5, %s503
          %p505 = scmp.lt.s32.totalorder %s504, 4
          %s506 = scalar_select %p505, %s504, 4
          %s507 = smul.u32 8, %s506
          %s508 = ssub.s32 32, %s507
          %s509 = sshll.u32 %s508, 4
          %510 = vsyncadd %s496, %s509
          %p511 = scmp.ne.s32.totalorder 0, %s507
          %s512 = smul.addr %s503, 8
          %s513 = scalar_lea.hbm %s5, %s512
          %s514 = smul.u32 8, %s506
          %s515 = sshll.u32 %s499, 4
          %s516 = int_to_ptr.vmem [resolvable:$true] %s515
          %s517 = sshll.u32 %s513, 4
          %s518 = int_to_ptr.hbm [resolvable:$true] %s517
          %s519 = sshll.u32 %s514, 4
          %523 = dma.vmem_to_hbm [thread:$0]  (%p511), %s516, %s519, %s518, %s496, 128, 128, 8
        $region56: #{tpu_custom_call.1} parent=39 // pred_fallthru
          _
      $region40: #{tpu_custom_call.1} parent=5 // pred_fallthru
        _
      %p524 = scmp.le.s32.totalorder 2, %s18
      // Predicated region
      $region57: #{tpu_custom_call.1} parent=5 // pred_check
        %p525 = pneg %p524
      $region58: #{tpu_custom_call.1} parent=5 // pred_check_branch
        %527 = sbr.rel (%p525) target = $region60
      $region59: #{tpu_custom_call.1} parent=5 // pred_region
        %s528 = ssub.s32 %s18, 2
        // Predicated region
        $region61: #{tpu_custom_call.1} parent=59 // pred_check
          %p529 = pneg %p157
        $region62: #{tpu_custom_call.1} parent=59 // pred_check_branch
          %531 = sbr.rel (%p529) target = $region64
        $region63: #{tpu_custom_call.1} parent=59 // pred_region
          %s532 = sand.u32 %s142, 1
          %s533 = scalar_lea.sflag [#allocation4], %s532
          %s534 = sand.u32 %s142, 1
          %s535 = smul.addr %s534, 32
          %s536 = scalar_lea.vmem [#allocation8], %s535
          %538 = dma.done %s533, 512
        $region64: #{tpu_custom_call.1} parent=59 // pred_fallthru
          _
      $region60: #{tpu_custom_call.1} parent=5 // pred_fallthru
        _
    $region6: #{tpu_custom_call.1} parent=1 // loop_footer
      %s22 = sadd.s32 1, %s18
    $region7: #{tpu_custom_call.1} parent=1 // loop_footer_branch
      %17 = sbr.rel target = $region3
    $region8: #{tpu_custom_call.1} parent=1 // loop_exit
      _
    %539 = vsyncpa [#allocation3], 1
    %s540 = scalar_lea.sflag [#allocation3], 1
    %541 = vsyncpa %s540, 1
    %542 = vsyncpa [#allocation6], 1
    %543 = vsyncpa [#allocation4], 1
    %s544 = scalar_lea.sflag [#allocation4], 1
    %545 = vsyncpa %s544, 1

</llo_original>
